<compile_context>
chip_gen: v5e
topology: v5e:2x2
jax: 0.10.0
libtpu: 0.0.40
codegen_flags: <defaults>
</compile_context>

<pallas_src>
import math
from functools import partial

import jax
import jax.numpy as jnp
from jax import lax
from jax.experimental import pallas as pl
from jax.experimental.pallas import tpu as pltpu


def _fuzzy_loss_kernel(x_ref, t_ref, o_ref, *, h_const, on, off):
    """Fused label-smoothed KLDiv-with-log-softmax, one f32 value per row.

    x_ref: (tile_b, C)  logits in the caller's dtype (bf16/f32)
    t_ref: (tile_b, 1)  int32 labels
    o_ref: (tile_b, 1)  f32 per-row loss contribution (summed over classes)
    """
    x = x_ref[...].astype(jnp.float32)          # (tile_b, C) f32
    tb, c = x.shape

    col = lax.broadcasted_iota(jnp.int32, (tb, c), 1)
    t = t_ref[...]                               # (tile_b, 1) int32

    # Numerically stable logsumexp over the class axis.
    row_max = jnp.max(x, axis=-1, keepdims=True)
    sumexp = jnp.sum(jnp.exp(x - row_max), axis=-1, keepdims=True)

    # sum_c fuzzy_c * x_c  (the "cross" term), fuzzy taking only two values.
    w = jnp.where(col == t, jnp.float32(on), jnp.float32(off))
    wx = jnp.sum(w * x, axis=-1, keepdims=True)

    cross = wx - row_max - jnp.log(sumexp)       # sum_c fuzzy_c * logsoftmax(x)_c
    o_ref[...] = jnp.float32(h_const) - cross


def _round_up(x, m):
    return ((x + m - 1) // m) * m


def _xlogx(v):
    return v * math.log(v) if v > 0.0 else 0.0


def _choose_tile_b(batch, num_classes, itemsize, vmem_budget_bytes=20 << 20):
    """Largest batch tile under the VMEM budget, aiming for >= ~8 grid steps."""
    c_pad = _round_up(num_classes, 128)          # internal VMEM lane padding
    # double-buffered input + ~4 f32 full-tile temporaries + label/out rows
    bytes_per_row = 2 * c_pad * itemsize + 4 * c_pad * 4 + 64
    cap = max(8, (vmem_budget_bytes // bytes_per_row) // 8 * 8)
    cap = min(cap, 1024)
    steps_target = _round_up(-(-batch // 8), 8)  # ~8 grid steps when batch allows
    tile_b = min(cap, max(8, steps_target), _round_up(batch, 8))
    return int(tile_b), bytes_per_row


def fuzzy_loss(predictions, truth, num_classes, mass_redistribution, *, tile_b=None):
    """predictions: (B, num_classes) logits (f32 or bf16); truth: (B,) ints -> scalar."""
    predictions = jnp.asarray(predictions)       # keep caller dtype (no HBM cast copy)
    truth = jnp.asarray(truth, dtype=jnp.int32)
    B, C = predictions.shape
    assert C == num_classes, "predictions last dim must equal num_classes"
    assert num_classes >= 2, "FuzzyLoss needs at least 2 classes"

    mass = float(mass_redistribution)
    on = 1.0 - mass
    off = mass / (num_classes - 1)
    h_const = _xlogx(on) + (num_classes - 1) * _xlogx(off)   # sum_c fuzzy_c*log(fuzzy_c)

    itemsize = jnp.dtype(predictions.dtype).itemsize
    if tile_b is None:
        tile_b, bytes_per_row = _choose_tile_b(B, C, itemsize)
    else:
        tile_b = int(_round_up(tile_b, 8))
        _, bytes_per_row = _choose_tile_b(B, C, itemsize)

    grid = (pl.cdiv(B, tile_b),)
    vmem_limit = int(min(max(tile_b * bytes_per_row + (1 << 20), 4 << 20), 32 << 20))

    kernel = partial(_fuzzy_loss_kernel, h_const=h_const, on=on, off=off)

    per_row = pl.pallas_call(
        kernel,
        out_shape=jax.ShapeDtypeStruct((B, 1), jnp.float32),
        grid=grid,
        in_specs=[
            pl.BlockSpec((tile_b, C), lambda i: (i, 0)),   # full class extent, no pad
            pl.BlockSpec((tile_b, 1), lambda i: (i, 0)),   # labels
        ],
        out_specs=pl.BlockSpec((tile_b, 1), lambda i: (i, 0)),
        compiler_params=pltpu.CompilerParams(
            dimension_semantics=("parallel",),
            vmem_limit_bytes=vmem_limit,
        ),
        cost_estimate=pl.CostEstimate(
            flops=6 * B * C,
            transcendentals=B * (C + 1),
            bytes_accessed=B * C * itemsize + B * 4 + B * 4,
        ),
    )(predictions, truth.reshape(B, 1))

    # KLDivLoss reduction='batchmean': sum over all elements / batch size.
    return jnp.sum(per_row) / B


def fuzzy_loss_ref(predictions, truth, num_classes, mass):
    """Pure-JAX reference mirroring the PyTorch module."""
    logp = jax.nn.log_softmax(predictions.astype(jnp.float32), axis=-1)
    off = mass / (num_classes - 1)
    fuzzy = jnp.full(predictions.shape, off, dtype=jnp.float32)
    fuzzy = fuzzy.at[jnp.arange(predictions.shape[0]), truth].set(1.0 - mass)
    elem = fuzzy * (jnp.log(fuzzy) - logp)
    return jnp.sum(elem) / predictions.shape[0]


if __name__ == "__main__":
    key = jax.random.PRNGKey(0)
    k1, k2, k3, k4 = jax.random.split(key, 4)
    mass_redistribution = 0.1

    # Case 1: small f32 logits, batch equals one tile.
    B1, C1 = 8, 10
    x1 = jax.random.normal(k1, (B1, C1), dtype=jnp.float32)
    t1 = jax.random.randint(k2, (B1,), 0, C1, dtype=jnp.int32)
    loss1 = jax.block_until_ready(fuzzy_loss(x1, t1, C1, mass_redistribution))
    ref1 = fuzzy_loss_ref(x1, t1, C1, mass_redistribution)
    assert loss1.shape == ()
    assert jnp.allclose(loss1, ref1, atol=1e-5, rtol=1e-5), (loss1, ref1)

    # Case 2: bf16 logits, batch not a multiple of the tile (partial last block).
    B2, C2 = 20, 12
    x2 = jax.random.normal(k3, (B2, C2), dtype=jnp.bfloat16)
    t2 = jax.random.randint(k4, (B2,), 0, C2, dtype=jnp.int32)
    loss2 = jax.block_until_ready(fuzzy_loss(x2, t2, C2, mass_redistribution, tile_b=8))
    ref2 = fuzzy_loss_ref(x2, t2, C2, mass_redistribution)
    assert jnp.allclose(loss2, ref2, atol=1e-4, rtol=1e-4), (loss2, ref2)

    print("KERNEL_OK")
</pallas_src>

<mosaic_0001>
module attributes {stable_mosaic.version = 11 : i64} {
  func.func @_fuzzy_loss_kernel(%arg0: i32, %arg1: memref<8x10xf32, #tpu.memory_space<vmem>>, %arg2: memref<8x1xi32, #tpu.memory_space<vmem>>, %arg3: memref<8x1xf32, #tpu.memory_space<vmem>>) attributes {dimension_semantics = [#tpu.dimension_semantics<parallel>], iteration_bounds = array<i64: 1>, scalar_prefetch = 0 : i64, scratch_operands = 0 : i64, tpu.core_type = #tpu.core_type<tc>, window_params = [{transform_indices = @transform_0, window_bounds = array<i64: 8, 10>}, {transform_indices = @transform_1, window_bounds = array<i64: 8, 1>}, {transform_indices = @transform_2, window_bounds = array<i64: 8, 1>}]} {
    %c0 = arith.constant 0 : index
    %c0_0 = arith.constant 0 : index
    %0 = vector.load %arg1[%c0, %c0_0] : memref<8x10xf32, #tpu.memory_space<vmem>>, vector<8x10xf32>
    %1 = tpu.iota {dimensions = array<i32: 1>} : vector<8x10xi32>
    %c0_1 = arith.constant 0 : index
    %c0_2 = arith.constant 0 : index
    %2 = vector.load %arg2[%c0_1, %c0_2] : memref<8x1xi32, #tpu.memory_space<vmem>>, vector<8x1xi32>
    %cst = arith.constant dense<0xFF800000> : vector<8xf32>
    %3 = vector.multi_reduction <maximumf>, %0, %cst [1] : vector<8x10xf32> to vector<8xf32>
    %4 = vector.shape_cast %3 : vector<8xf32> to vector<8x1xf32>
    %5 = vector.broadcast %4 : vector<8x1xf32> to vector<8x10xf32>
    %6 = arith.subf %0, %5 : vector<8x10xf32>
    %7 = math.exp %6 : vector<8x10xf32>
    %cst_3 = arith.constant dense<0.000000e+00> : vector<8xf32>
    %8 = vector.multi_reduction <add>, %7, %cst_3 [1] : vector<8x10xf32> to vector<8xf32>
    %9 = vector.shape_cast %8 : vector<8xf32> to vector<8x1xf32>
    %10 = vector.broadcast %2 : vector<8x1xi32> to vector<8x10xi32>
    %11 = arith.cmpi eq, %1, %10 : vector<8x10xi32>
    %cst_4 = arith.constant 0.899999976 : f32
    %cst_5 = arith.constant 0.0111111114 : f32
    %12 = vector.broadcast %cst_4 : f32 to vector<8x10xf32>
    %13 = vector.broadcast %cst_5 : f32 to vector<8x10xf32>
    %14 = arith.select %11, %12, %13 : vector<8x10xi1>, vector<8x10xf32>
    %15 = arith.mulf %14, %0 : vector<8x10xf32>
    %cst_6 = arith.constant dense<0.000000e+00> : vector<8xf32>
    %16 = vector.multi_reduction <add>, %15, %cst_6 [1] : vector<8x10xf32> to vector<8xf32>
    %17 = vector.shape_cast %16 : vector<8xf32> to vector<8x1xf32>
    %18 = arith.subf %17, %4 : vector<8x1xf32>
    %19 = math.log %9 : vector<8x1xf32>
    %20 = arith.subf %18, %19 : vector<8x1xf32>
    %cst_7 = arith.constant -0.544805408 : f32
    %21 = vector.broadcast %cst_7 : f32 to vector<8x1xf32>
    %22 = arith.subf %21, %20 : vector<8x1xf32>
    %c0_8 = arith.constant 0 : index
    %c0_9 = arith.constant 0 : index
    %23 = vector.load %arg3[%c0_8, %c0_9] : memref<8x1xf32, #tpu.memory_space<vmem>>, vector<8x1xf32>
    tpu.vector_store %arg3[%c0_8, %c0_9], %22 {strides = array<i32>} : memref<8x1xf32, #tpu.memory_space<vmem>>, vector<8x1xf32>,
    return
  }
  func.func @transform_0(%arg0: i32) -> (i32, i32) {
    %c0_i32 = arith.constant 0 : i32
    %c0_i32_0 = arith.constant 0 : i32
    return %arg0, %c0_i32 : i32, i32
  }
  func.func @transform_1(%arg0: i32) -> (i32, i32) {
    %c0_i32 = arith.constant 0 : i32
    %c0_i32_0 = arith.constant 0 : i32
    return %arg0, %c0_i32 : i32, i32
  }
  func.func @transform_2(%arg0: i32) -> (i32, i32) {
    %c0_i32 = arith.constant 0 : i32
    %c0_i32_0 = arith.constant 0 : i32
    return %arg0, %c0_i32 : i32, i32
  }
}

</mosaic_0001>

<llo_original>
// kernel: tpu_custom_call.1
$region0: #{tpu_custom_call.1}
  #allocation0 [shape = 'u32[]', space=smem, size = 0x4, offset = 0x4, fixed_abs, tag = 'smem constant byte address 0x4 - core index']
  #allocation1 [shape = 'u32[72,128]{1,0:T(1,128)}', space=vmem, size = 0x9000, scoped, tag = 'internal scratch']
  %s0 = inlined_call_operand.vmem [shape: f32[8,10], index: 0, kind: input, shape index: {}]
  %s1 = inlined_call_operand.vmem [shape: s32[8,1], index: 1, kind: input, shape index: {}]
  %s2 = inlined_call_operand.vmem [shape: f32[8,1], index: 2, kind: output, shape index: {}]
  %s3 = sld [smem:[#allocation0]]
  $region18: #{tpu_custom_call.1} parent=0
    _
  %s5 = ssub.s32 1, %s3
  %s6 = scalar_select 0, %s5, %s3
  // Predicated region
  $region2: #{tpu_custom_call.1} parent=0 // pred_check
    _
  $region3: #{tpu_custom_call.1} parent=0 // pred_check_branch
    %8 = sbr.rel (0) target = $region5
  $region4: #{tpu_custom_call.1} parent=0 // pred_region
    _
  $region5: #{tpu_custom_call.1} parent=0 // pred_fallthru
    _
  // Predicated region
  $region6: #{tpu_custom_call.1} parent=0 // pred_check
    _
  $region7: #{tpu_custom_call.1} parent=0 // pred_check_branch
    %10 = sbr.rel (0) target = $region9
  $region8: #{tpu_custom_call.1} parent=0 // pred_region
    _
  $region9: #{tpu_custom_call.1} parent=0 // pred_fallthru
    _
  %v11 = vld [vmem:[%s0] sm:$0xff]
  %v12 = vlaneseq
  %v13 = vand.u32 %v12, 127
  %v14 = vld [vmem:[%s1] sm:$0xff]
  %vm15 = vcmask 80896
  %v16 = vsel %vm15, %v11, -inf
  %17 = vmax.xlane.f32.xlu0 %v16
  %v18 = vpop.xlane.xlu0 %17
  %v19 = vsub.f32 %v11, %v18
  %v20 = vmul.f32 %v19, 1.442695
  %v21 = vpow.pop %v20
  %v22 = vsel %vm15, %v21, 0.0
  %23 = vadd.xlane.f32.xlu0 %v22
  %v24 = vpop.xlane.xlu0 %23
  %25 = vset.pattern.permute.xlu0 0
  %26 = vperm.xlu0 %25, %v14
  %v27 = vpop.permute.xlu0 %26
  %vm28 = vcmp.eq.s32.totalorder %v13, %v27
  %v29 = vsel %vm28, 0.9, 0.011111111
  %v30 = vmul.f32 %v29, %v11
  %v31 = vsel %vm15, %v30, 0.0
  %32 = vadd.xlane.f32.xlu0 %v31
  %v33 = vpop.xlane.xlu0 %32
  %v34 = vsub.f32 %v33, %v18
  %v35 = vlog2.pop %v24
  %v36 = vmul.f32 %v35, 0.6931472
  %v37 = vsub.f32 %v34, %v36
  %v38 = vsub.f32 -0.5448054, %v37
  %vm39 = vcmask 7168
  %40 = vst.msk [vmem:[%s2] sm:$0xff] %vm39, %v38
  // Predicated region
  $region10: #{tpu_custom_call.1} parent=0 // pred_check
    _
  $region11: #{tpu_custom_call.1} parent=0 // pred_check_branch
    %42 = sbr.rel (0) target = $region13
  $region12: #{tpu_custom_call.1} parent=0 // pred_region
    _
  $region13: #{tpu_custom_call.1} parent=0 // pred_fallthru
    _
  // Predicated region
  $region14: #{tpu_custom_call.1} parent=0 // pred_check
    _
  $region15: #{tpu_custom_call.1} parent=0 // pred_check_branch
    %44 = sbr.rel (0) target = $region17
  $region16: #{tpu_custom_call.1} parent=0 // pred_region
    _
  $region17: #{tpu_custom_call.1} parent=0 // pred_fallthru
    _

</llo_original>
